<compile_context>
chip_gen: v7x
topology: tpu7x:2x2x1
jax: 0.10.0
libtpu: 0.0.40
codegen_flags: <defaults>
</compile_context>

<pallas_src>
import jax
import jax.numpy as jnp
from jax.experimental import pallas as pl
from jax.experimental.pallas import tpu as pltpu


def _centernet_reg_loss_kernel(feat_ref, hw_ref, mask_ref, tgt_ref, out_ref,
                               pred_ref):
    # feat_ref : (Bt, D, H, W) native dtype -- batch block of `output`, NCHW
    # hw_ref   : (Bt, M, 2)  i32            -- [..., 0] = ind // W, [..., 1] = ind % W
    # mask_ref : (Bt, M, 1)  f32
    # tgt_ref  : (Bt, M, D)  f32
    # out_ref  : (1, 128)    f32            -- lanes [0:D]: per-dim |.| partial sums,
    #                                          lane D: mask-count partial sum
    # pred_ref : (M, D)      f32 scratch    -- gathered predictions (one sub-batch)
    Bt, D, H, W = feat_ref.shape
    M = mask_ref.shape[1]
    fdt = feat_ref.dtype

    # Hoisted once per kernel invocation (JAX does not CSE broadcast_in_dim).
    iota_h = jax.lax.broadcasted_iota(jnp.int32, (M, H), 1)
    iota_w = jax.lax.broadcasted_iota(jnp.int32, (M, W), 1)

    loss_acc = jnp.zeros((1, D), jnp.float32)
    num_acc = jnp.zeros((1, 1), jnp.float32)

    # Bt is small and static -> unrolled at trace time; per-iteration live
    # values are a few KiB, so no live-range pressure.
    for b in range(Bt):
        hw = hw_ref[b]                                    # (M, 2)
        h_idx = hw[:, 0:1]                                # (M, 1)
        w_idx = hw[:, 1:2]                                # (M, 1)
        mask = mask_ref[b]                                # (M, 1)
        tgt = tgt_ref[b]                                  # (M, D)

        # Small per-sub-batch selectors.  Lane-dense for the standard W=128
        # CenterNet head; at W<128 they are lane-sparse but only M*W elements.
        oh_h = (iota_h == h_idx).astype(fdt)              # (M, H), 0/1 exact in bf16
        oh_w = (iota_w == w_idx).astype(jnp.float32)      # (M, W)

        # Gather pred[m, d] = feat[b, d, h_m, w_m]:
        # MXU row-select (oh_h @ feat[d]) then an exact lane-masked reduce
        # over W.  Mosaic's default f32 matmul path is exact here (verified
        # against the pure-JAX reference); bf16 inputs are exact by
        # construction (one-hot operand, f32 accumulation).
        for d in range(D):                                # D is tiny and static
            rows = jnp.dot(oh_h, feat_ref[b, d],
                           preferred_element_type=jnp.float32)          # (M, W)
            pred_ref[:, d:d + 1] = jnp.sum(rows * oh_w, axis=1, keepdims=True)

        pred = pred_ref[...]                              # (M, D)

        # _reg_loss, op-for-op with the PyTorch module (keeps the reference's
        # 0 * NaN => NaN semantics for NaN targets).
        m = mask * (~jnp.isnan(tgt)).astype(jnp.float32)                 # (M, D)
        loss = jnp.abs(pred * m - tgt * m)                               # (M, D)
        loss_acc = loss_acc + jnp.sum(loss, axis=0, keepdims=True)       # (1, D)
        num_acc = num_acc + jnp.sum(mask, keepdims=True)                 # (1, 1)

    # Single lane-padded output row per grid step (one output DMA descriptor).
    out_ref[...] = jnp.zeros((1, 128), jnp.float32)
    out_ref[:, 0:D] = loss_acc
    out_ref[:, D:D + 1] = num_acc


def _choose_batch_block(B, per_batch_bytes, target_bytes):
    """Largest divisor Bt of B whose feat block fits `target_bytes`, keeping
    >= 2 grid steps when B >= 2 so both TensorCores stay busy (v7x)."""
    best = 1
    for bt in range(1, B + 1):
        if B % bt:
            continue
        if bt > 1 and bt * per_batch_bytes > target_bytes:
            break
        if B >= 2 and B // bt < 2:
            continue
        best = bt
    return best


def centernet_reg_loss(output, mask, ind, target):
    """output: (B, dim, H, W); mask: (B, M); ind: (B, M); target: (B, M, dim).
    Returns loss of shape (dim,) -- same as the PyTorch module."""
    B, D, H, W = output.shape
    M = ind.shape[1]
    assert D + 1 <= 128, "reg dim must fit the packed 128-lane output row"

    # Tiny side tensors; the big `output` tensor is passed through untouched.
    ind_i32 = ind.astype(jnp.int32)
    hw = jnp.stack([ind_i32 // W, ind_i32 % W], axis=-1)          # (B, M, 2)
    mask_f = mask.astype(jnp.float32).reshape(B, M, 1)
    tgt = target.astype(jnp.float32)

    itemsize = jnp.dtype(output.dtype).itemsize
    per_batch_feat = D * H * W * itemsize
    per_batch_side = M * (2 * 4 + 4 + D * 4)

    # Block sizing: ~8 MiB feat blocks reach the measured ~85% HBM-roofline
    # plateau on all generations while a double-buffered block stays well
    # inside v7x's 64 MiB physical VMEM (v5e/v6e have 128 MiB).
    try:
        vmem_cap = int(pltpu.get_tpu_info().vmem_capacity_bytes)
    except Exception:  # conservative fallback (v7x physical VMEM per TC)
        vmem_cap = 64 * 1024 * 1024
    target_block = min(8 * 1024 * 1024, vmem_cap // 4)

    Bt = _choose_batch_block(B, per_batch_feat + per_batch_side, target_block)
    G = B // Bt

    dbl = 2 * Bt * (per_batch_feat + per_batch_side) + 2 * 128 * 4
    vmem_limit = int(min(max(32 * 1024 * 1024, 3 * dbl), (vmem_cap * 3) // 4))

    # TODO(synk): if one batch's (D, H, W) slab ever outgrows the VMEM budget,
    # add an H grid axis and accumulate the partials across it.
    # TODO(synk): when M << H, a scalar-prefetched DMA row-gather (fetch only
    # the M needed W-wide rows) would cut HBM reads by ~H/M; not worth it for
    # default CenterNet configs where M ~ H.

    parts = pl.pallas_call(
        _centernet_reg_loss_kernel,
        grid=(G,),
        in_specs=[
            pl.BlockSpec((Bt, D, H, W), lambda g: (g, 0, 0, 0)),
            pl.BlockSpec((Bt, M, 2), lambda g: (g, 0, 0)),
            pl.BlockSpec((Bt, M, 1), lambda g: (g, 0, 0)),
            pl.BlockSpec((Bt, M, D), lambda g: (g, 0, 0)),
        ],
        out_specs=pl.BlockSpec((None, 1, 128), lambda g: (g, 0, 0)),
        out_shape=jax.ShapeDtypeStruct((G, 1, 128), jnp.float32),
        scratch_shapes=[pltpu.VMEM((M, D), jnp.float32)],
        compiler_params=pltpu.CompilerParams(
            dimension_semantics=("parallel",),
            vmem_limit_bytes=vmem_limit),
        cost_estimate=pl.CostEstimate(
            flops=8 * B * M * D,            # real arithmetic only -> memory-bound
            transcendentals=0,
            bytes_accessed=(B * D * H * W * itemsize
                            + B * M * (2 * 4 + 4 + D * 4) + G * 128 * 4)),
    )(output, hw, mask_f, tgt)

    sums = jnp.sum(parts[:, 0, :], axis=0)        # (128,): lanes [0:D] + lane D
    return sums[:D] / (sums[D] + 0.0001)


def _reference(output_nchw, mask, ind, target):
    """Pure-JAX reference replicating the PyTorch module."""
    B, D, H, W = output_nchw.shape
    feat = jnp.transpose(output_nchw, (0, 2, 3, 1)).reshape(B, H * W, D)
    pred = jnp.take_along_axis(feat, ind[:, :, None].astype(jnp.int32), axis=1)
    num = jnp.sum(mask.astype(jnp.float32))
    m = mask.astype(jnp.float32)[:, :, None] * (~jnp.isnan(target)).astype(jnp.float32)
    loss = jnp.abs(pred * m - target * m)
    per_dim = jnp.sum(loss, axis=(0, 1))
    return per_dim / (num + 0.0001)


if __name__ == "__main__":
    key = jax.random.PRNGKey(0)
    k1, k2, k3, k4 = jax.random.split(key, 4)

    B, D, H, W, M = 2, 4, 16, 16, 8  # batch, dim, spatial, max_objects

    output = jax.random.normal(k1, (B, D, H, W), dtype=jnp.float32)
    ind = jax.random.randint(k2, (B, M), 0, H * W, dtype=jnp.int32)
    mask = (jax.random.uniform(k3, (B, M)) > 0.3).astype(jnp.float32)
    target = jax.random.normal(k4, (B, M, D), dtype=jnp.float32)

    loss = jax.block_until_ready(centernet_reg_loss(output, mask, ind, target))
    ref = jax.block_until_ready(_reference(output, mask, ind, target))

    assert loss.shape == (D,)
    assert jnp.allclose(loss, ref, rtol=1e-5, atol=1e-5), (loss, ref)

    print("KERNEL_OK")
</pallas_src>

<mosaic_0001>
module attributes {stable_mosaic.version = 11 : i64} {
  func.func @_centernet_reg_loss_kernel(%arg0: i32, %arg1: memref<1x4x16x16xf32, #tpu.memory_space<vmem>>, %arg2: memref<1x8x2xi32, #tpu.memory_space<vmem>>, %arg3: memref<1x8x1xf32, #tpu.memory_space<vmem>>, %arg4: memref<1x8x4xf32, #tpu.memory_space<vmem>>, %arg5: memref<1x1x128xf32, #tpu.memory_space<vmem>>, %arg6: memref<8x4xf32, #tpu.memory_space<vmem>>) attributes {dimension_semantics = [#tpu.dimension_semantics<parallel>], iteration_bounds = array<i64: 2>, scalar_prefetch = 0 : i64, scratch_operands = 1 : i64, tpu.core_type = #tpu.core_type<tc>, window_params = [{transform_indices = @transform_0, window_bounds = array<i64: 1, 4, 16, 16>}, {transform_indices = @transform_1, window_bounds = array<i64: 1, 8, 2>}, {transform_indices = @transform_2, window_bounds = array<i64: 1, 8, 1>}, {transform_indices = @transform_3, window_bounds = array<i64: 1, 8, 4>}, {transform_indices = @transform_4, window_bounds = array<i64: 1, 1, 128>}]} {
    %0 = tpu.iota {dimensions = array<i32: 1>} : vector<8x16xi32>
    %1 = tpu.iota {dimensions = array<i32: 1>} : vector<8x16xi32>
    %cst = arith.constant 0.000000e+00 : f32
    %2 = vector.broadcast %cst : f32 to vector<1x4xf32>
    %cst_0 = arith.constant 0.000000e+00 : f32
    %3 = vector.broadcast %cst_0 : f32 to vector<1x1xf32>
    %c0 = arith.constant 0 : index
    %c0_1 = arith.constant 0 : index
    %c0_2 = arith.constant 0 : index
    %4 = vector.load %arg2[%c0, %c0_1, %c0_2] : memref<1x8x2xi32, #tpu.memory_space<vmem>>, vector<1x8x2xi32>
    %5 = vector.shape_cast %4 : vector<1x8x2xi32> to vector<8x2xi32>
    %6 = vector.extract_strided_slice %5 {offsets = [0, 0], sizes = [8, 1], strides = [1, 1]} : vector<8x2xi32> to vector<8x1xi32>
    %7 = vector.extract_strided_slice %5 {offsets = [0, 1], sizes = [8, 1], strides = [1, 1]} : vector<8x2xi32> to vector<8x1xi32>
    %c0_3 = arith.constant 0 : index
    %c0_4 = arith.constant 0 : index
    %c0_5 = arith.constant 0 : index
    %8 = vector.load %arg3[%c0_3, %c0_4, %c0_5] : memref<1x8x1xf32, #tpu.memory_space<vmem>>, vector<1x8x1xf32>
    %9 = vector.shape_cast %8 : vector<1x8x1xf32> to vector<8x1xf32>
    %c0_6 = arith.constant 0 : index
    %c0_7 = arith.constant 0 : index
    %c0_8 = arith.constant 0 : index
    %10 = vector.load %arg4[%c0_6, %c0_7, %c0_8] : memref<1x8x4xf32, #tpu.memory_space<vmem>>, vector<1x8x4xf32>
    %11 = vector.shape_cast %10 : vector<1x8x4xf32> to vector<8x4xf32>
    %12 = vector.broadcast %6 : vector<8x1xi32> to vector<8x16xi32>
    %13 = arith.cmpi eq, %0, %12 : vector<8x16xi32>
    %14 = arith.extui %13 : vector<8x16xi1> to vector<8x16xi32>
    %15 = arith.sitofp %14 : vector<8x16xi32> to vector<8x16xf32>
    %16 = vector.broadcast %7 : vector<8x1xi32> to vector<8x16xi32>
    %17 = arith.cmpi eq, %1, %16 : vector<8x16xi32>
    %18 = arith.extui %17 : vector<8x16xi1> to vector<8x16xi32>
    %19 = arith.sitofp %18 : vector<8x16xi32> to vector<8x16xf32>
    %c0_9 = arith.constant 0 : index
    %c0_10 = arith.constant 0 : index
    %c0_11 = arith.constant 0 : index
    %c0_12 = arith.constant 0 : index
    %20 = vector.load %arg1[%c0_9, %c0_10, %c0_11, %c0_12] : memref<1x4x16x16xf32, #tpu.memory_space<vmem>>, vector<1x1x16x16xf32>
    %21 = vector.shape_cast %20 : vector<1x1x16x16xf32> to vector<16x16xf32>
    %cst_13 = arith.constant dense<0.000000e+00> : vector<8x16xf32>
    %22 = tpu.matmul %15, %21, %cst_13 {dimension_numbers = #tpu.dot_dimension_numbers<[1], [0], [0], [1], [0, 0, 1, 1], [], []>} : vector<8x16xf32>, vector<16x16xf32>, vector<8x16xf32> -> vector<8x16xf32>
    %23 = arith.mulf %22, %19 : vector<8x16xf32>
    %cst_14 = arith.constant dense<0.000000e+00> : vector<8xf32>
    %24 = vector.multi_reduction <add>, %23, %cst_14 [1] : vector<8x16xf32> to vector<8xf32>
    %25 = vector.shape_cast %24 : vector<8xf32> to vector<8x1xf32>
    %c0_15 = arith.constant 0 : index
    %c0_16 = arith.constant 0 : index
    %26 = vector.load %arg6[%c0_15, %c0_16] : memref<8x4xf32, #tpu.memory_space<vmem>>, vector<8x1xf32>
    tpu.vector_store %arg6[%c0_15, %c0_16], %25 {strides = array<i32>} : memref<8x4xf32, #tpu.memory_space<vmem>>, vector<8x1xf32>,
    %c0_17 = arith.constant 0 : index
    %c1 = arith.constant 1 : index
    %c0_18 = arith.constant 0 : index
    %c0_19 = arith.constant 0 : index
    %27 = vector.load %arg1[%c0_17, %c1, %c0_18, %c0_19] : memref<1x4x16x16xf32, #tpu.memory_space<vmem>>, vector<1x1x16x16xf32>
    %28 = vector.shape_cast %27 : vector<1x1x16x16xf32> to vector<16x16xf32>
    %cst_20 = arith.constant dense<0.000000e+00> : vector<8x16xf32>
    %29 = tpu.matmul %15, %28, %cst_20 {dimension_numbers = #tpu.dot_dimension_numbers<[1], [0], [0], [1], [0, 0, 1, 1], [], []>} : vector<8x16xf32>, vector<16x16xf32>, vector<8x16xf32> -> vector<8x16xf32>
    %30 = arith.mulf %29, %19 : vector<8x16xf32>
    %cst_21 = arith.constant dense<0.000000e+00> : vector<8xf32>
    %31 = vector.multi_reduction <add>, %30, %cst_21 [1] : vector<8x16xf32> to vector<8xf32>
    %32 = vector.shape_cast %31 : vector<8xf32> to vector<8x1xf32>
    %c0_22 = arith.constant 0 : index
    %c1_23 = arith.constant 1 : index
    %33 = vector.load %arg6[%c0_22, %c1_23] : memref<8x4xf32, #tpu.memory_space<vmem>>, vector<8x1xf32>
    tpu.vector_store %arg6[%c0_22, %c1_23], %32 {strides = array<i32>} : memref<8x4xf32, #tpu.memory_space<vmem>>, vector<8x1xf32>,
    %c0_24 = arith.constant 0 : index
    %c2 = arith.constant 2 : index
    %c0_25 = arith.constant 0 : index
    %c0_26 = arith.constant 0 : index
    %34 = vector.load %arg1[%c0_24, %c2, %c0_25, %c0_26] : memref<1x4x16x16xf32, #tpu.memory_space<vmem>>, vector<1x1x16x16xf32>
    %35 = vector.shape_cast %34 : vector<1x1x16x16xf32> to vector<16x16xf32>
    %cst_27 = arith.constant dense<0.000000e+00> : vector<8x16xf32>
    %36 = tpu.matmul %15, %35, %cst_27 {dimension_numbers = #tpu.dot_dimension_numbers<[1], [0], [0], [1], [0, 0, 1, 1], [], []>} : vector<8x16xf32>, vector<16x16xf32>, vector<8x16xf32> -> vector<8x16xf32>
    %37 = arith.mulf %36, %19 : vector<8x16xf32>
    %cst_28 = arith.constant dense<0.000000e+00> : vector<8xf32>
    %38 = vector.multi_reduction <add>, %37, %cst_28 [1] : vector<8x16xf32> to vector<8xf32>
    %39 = vector.shape_cast %38 : vector<8xf32> to vector<8x1xf32>
    %c0_29 = arith.constant 0 : index
    %c2_30 = arith.constant 2 : index
    %40 = vector.load %arg6[%c0_29, %c2_30] : memref<8x4xf32, #tpu.memory_space<vmem>>, vector<8x1xf32>
    tpu.vector_store %arg6[%c0_29, %c2_30], %39 {strides = array<i32>} : memref<8x4xf32, #tpu.memory_space<vmem>>, vector<8x1xf32>,
    %c0_31 = arith.constant 0 : index
    %c3 = arith.constant 3 : index
    %c0_32 = arith.constant 0 : index
    %c0_33 = arith.constant 0 : index
    %41 = vector.load %arg1[%c0_31, %c3, %c0_32, %c0_33] : memref<1x4x16x16xf32, #tpu.memory_space<vmem>>, vector<1x1x16x16xf32>
    %42 = vector.shape_cast %41 : vector<1x1x16x16xf32> to vector<16x16xf32>
    %cst_34 = arith.constant dense<0.000000e+00> : vector<8x16xf32>
    %43 = tpu.matmul %15, %42, %cst_34 {dimension_numbers = #tpu.dot_dimension_numbers<[1], [0], [0], [1], [0, 0, 1, 1], [], []>} : vector<8x16xf32>, vector<16x16xf32>, vector<8x16xf32> -> vector<8x16xf32>
    %44 = arith.mulf %43, %19 : vector<8x16xf32>
    %cst_35 = arith.constant dense<0.000000e+00> : vector<8xf32>
    %45 = vector.multi_reduction <add>, %44, %cst_35 [1] : vector<8x16xf32> to vector<8xf32>
    %46 = vector.shape_cast %45 : vector<8xf32> to vector<8x1xf32>
    %c0_36 = arith.constant 0 : index
    %c3_37 = arith.constant 3 : index
    %47 = vector.load %arg6[%c0_36, %c3_37] : memref<8x4xf32, #tpu.memory_space<vmem>>, vector<8x1xf32>
    tpu.vector_store %arg6[%c0_36, %c3_37], %46 {strides = array<i32>} : memref<8x4xf32, #tpu.memory_space<vmem>>, vector<8x1xf32>,
    %c0_38 = arith.constant 0 : index
    %c0_39 = arith.constant 0 : index
    %48 = vector.load %arg6[%c0_38, %c0_39] : memref<8x4xf32, #tpu.memory_space<vmem>>, vector<8x4xf32>
    %49 = arith.cmpf one, %11, %11 : vector<8x4xf32>
    %cst_40 = arith.constant dense<true> : vector<8x4xi1>
    %50 = arith.xori %49, %cst_40 : vector<8x4xi1>
    %51 = arith.extui %50 : vector<8x4xi1> to vector<8x4xi32>
    %52 = arith.sitofp %51 : vector<8x4xi32> to vector<8x4xf32>
    %53 = vector.broadcast %9 : vector<8x1xf32> to vector<8x4xf32>
    %54 = arith.mulf %53, %52 : vector<8x4xf32>
    %55 = arith.mulf %48, %54 : vector<8x4xf32>
    %56 = arith.mulf %11, %54 : vector<8x4xf32>
    %57 = arith.subf %55, %56 : vector<8x4xf32>
    %58 = math.absf %57 : vector<8x4xf32>
    %cst_41 = arith.constant dense<0.000000e+00> : vector<4xf32>
    %59 = vector.multi_reduction <add>, %58, %cst_41 [0] : vector<8x4xf32> to vector<4xf32>
    %60 = vector.shape_cast %59 : vector<4xf32> to vector<1x4xf32>
    %61 = arith.addf %2, %60 : vector<1x4xf32>
    %62 = vector.shape_cast %9 : vector<8x1xf32> to vector<1x8x1xf32>
    %cst_42 = arith.constant dense<0.000000e+00> : vector<1xf32>
    %63 = vector.multi_reduction <add>, %62, %cst_42 [1, 2] : vector<1x8x1xf32> to vector<1xf32>
    %64 = vector.shape_cast %63 : vector<1xf32> to vector<1x1x1xf32>
    %65 = vector.extract %64[0, 0, 0] : f32 from vector<1x1x1xf32>
    %66 = vector.broadcast %65 : f32 to vector<1x1xf32>
    %67 = arith.addf %3, %66 : vector<1x1xf32>
    %cst_43 = arith.constant 0.000000e+00 : f32
    %68 = vector.broadcast %cst_43 : f32 to vector<1x128xf32>
    %c0_44 = arith.constant 0 : index
    %c0_45 = arith.constant 0 : index
    %c0_46 = arith.constant 0 : index
    %69 = vector.load %arg5[%c0_44, %c0_45, %c0_46] : memref<1x1x128xf32, #tpu.memory_space<vmem>>, vector<1x1x128xf32>
    %70 = vector.shape_cast %69 : vector<1x1x128xf32> to vector<1x128xf32>
    %71 = vector.shape_cast %68 : vector<1x128xf32> to vector<1x1x128xf32>
    tpu.vector_store %arg5[%c0_44, %c0_45, %c0_46], %71 {strides = array<i32>} : memref<1x1x128xf32, #tpu.memory_space<vmem>>, vector<1x1x128xf32>,
    %c0_47 = arith.constant 0 : index
    %c0_48 = arith.constant 0 : index
    %c0_49 = arith.constant 0 : index
    %72 = vector.load %arg5[%c0_47, %c0_48, %c0_49] : memref<1x1x128xf32, #tpu.memory_space<vmem>>, vector<1x1x4xf32>
    %73 = vector.shape_cast %72 : vector<1x1x4xf32> to vector<1x4xf32>
    %74 = vector.shape_cast %61 : vector<1x4xf32> to vector<1x1x4xf32>
    tpu.vector_store %arg5[%c0_47, %c0_48, %c0_49], %74 {strides = array<i32>} : memref<1x1x128xf32, #tpu.memory_space<vmem>>, vector<1x1x4xf32>,
    %c0_50 = arith.constant 0 : index
    %c0_51 = arith.constant 0 : index
    %c4 = arith.constant 4 : index
    %75 = vector.load %arg5[%c0_50, %c0_51, %c4] : memref<1x1x128xf32, #tpu.memory_space<vmem>>, vector<1x1x1xf32>
    %76 = vector.shape_cast %75 : vector<1x1x1xf32> to vector<1x1xf32>
    %77 = vector.shape_cast %67 : vector<1x1xf32> to vector<1x1x1xf32>
    tpu.vector_store %arg5[%c0_50, %c0_51, %c4], %77 {strides = array<i32>} : memref<1x1x128xf32, #tpu.memory_space<vmem>>, vector<1x1x1xf32>,
    return
  }
  func.func @transform_0(%arg0: i32) -> (i32, i32, i32, i32) {
    %c0_i32 = arith.constant 0 : i32
    %c0_i32_0 = arith.constant 0 : i32
    %c0_i32_1 = arith.constant 0 : i32
    %c0_i32_2 = arith.constant 0 : i32
    return %arg0, %c0_i32, %c0_i32_0, %c0_i32_1 : i32, i32, i32, i32
  }
  func.func @transform_1(%arg0: i32) -> (i32, i32, i32) {
    %c0_i32 = arith.constant 0 : i32
    %c0_i32_0 = arith.constant 0 : i32
    %c0_i32_1 = arith.constant 0 : i32
    return %arg0, %c0_i32, %c0_i32_0 : i32, i32, i32
  }
  func.func @transform_2(%arg0: i32) -> (i32, i32, i32) {
    %c0_i32 = arith.constant 0 : i32
    %c0_i32_0 = arith.constant 0 : i32
    %c0_i32_1 = arith.constant 0 : i32
    return %arg0, %c0_i32, %c0_i32_0 : i32, i32, i32
  }
  func.func @transform_3(%arg0: i32) -> (i32, i32, i32) {
    %c0_i32 = arith.constant 0 : i32
    %c0_i32_0 = arith.constant 0 : i32
    %c0_i32_1 = arith.constant 0 : i32
    return %arg0, %c0_i32, %c0_i32_0 : i32, i32, i32
  }
  func.func @transform_4(%arg0: i32) -> (i32, i32, i32) {
    %c0_i32 = arith.constant 0 : i32
    %c0_i32_0 = arith.constant 0 : i32
    %c0_i32_1 = arith.constant 0 : i32
    return %arg0, %c0_i32, %c0_i32_0 : i32, i32, i32
  }
}

</mosaic_0001>

<llo_original>
// kernel: tpu_custom_call.1
$region0: #{tpu_custom_call.1}
  #allocation0 [shape = 'u32[]', space=smem, size = 0x4, offset = 0x4, fixed_abs, tag = 'smem constant byte address 0x4 - core index']
  #allocation1 [shape = 'u32[144,128]{1,0:T(1,128)}', space=vmem, size = 0x12000, scoped, tag = 'internal scratch']
  #allocation2 [shape = 'f32[8,4]{1,0:T(8,128)}', space=vmem, size = 0x1000, scoped, tag = 'scratch operand']
  %s0 = inlined_call_operand.hbm [shape: f32[2,4,16,16], index: 0, kind: input, shape index: {}]
  %s1 = inlined_call_operand.vmem [shape: s32[2,8,2], index: 1, kind: input, shape index: {}]
  %s2 = inlined_call_operand.vmem [shape: f32[2,8,1], index: 2, kind: input, shape index: {}]
  %s3 = inlined_call_operand.vmem [shape: f32[2,8,4], index: 3, kind: input, shape index: {}]
  %s4 = inlined_call_operand.hbm [shape: f32[2,1,128], index: 4, kind: output, shape index: {}]
  %s5 = sld [smem:[#allocation0]]
  $region53: #{tpu_custom_call.1} parent=0
    _
  %s7 = ssub.s32 1, %s5
  %s8 = scalar_select 0, %s7, %s5
  $region1: #{tpu_custom_call.1} parent=0
    #allocation3 [shape = 'u8[65536]{0}', space=vmem, size = 0x10000, scoped, tag = 'input window, operand 0']
    #allocation4 [shape = 's32[2]{0}', space=sflag, size = 0x8, scoped, tag = 'scoped memory for tpu_custom_call.1']
    #allocation5 [shape = 's32[2]{0}', space=sflag, size = 0x8, scoped, tag = 'scoped memory for tpu_custom_call.1']
    #allocation6 [shape = 'u8[1024]{0}', space=vmem, size = 0x400, scoped, tag = 'output window, operand 0']
    %9 = vsyncpa [#allocation4], 0
    %s10 = scalar_lea.sflag [#allocation4], 1
    %11 = vsyncpa %s10, 0
    %12 = vsyncpa [#allocation5], 0
    %s13 = scalar_lea.sflag [#allocation5], 1
    %14 = vsyncpa %s13, 0
    loop: start=0, step=1, limit=4
    $region2: #{tpu_custom_call.1} parent=1 // loop_pre_header
      _
    $region3: #{tpu_custom_call.1} parent=1 // loop_header
      %s16 = sphi 0, %s20
      %p17 = scmp.ge.s32.totalorder %s16, 4
      %s26 = sphi 0, %s28
      %s29 = sphi 0, %s26
      %s30 = sphi 0, %s29
      %s46 = sphi 0, %s30
      %s52 = sphi 0, %s54
      %s55 = sphi 0, %s52
      %s56 = sphi 0, %s55
      %s72 = sphi 0, %s56
      %s78 = sphi 0, %s80
      %s81 = sphi 0, %s78
      %s82 = sphi 0, %s81
      %s98 = sphi 0, %s82
      %s104 = sphi 0, %s106
      %s107 = sphi 0, %s104
      %s108 = sphi 0, %s107
      %s124 = sphi 0, %s108
      %s130 = sphi 0, %s132
      %s133 = sphi 0, %s130
      %s134 = sphi 0, %s133
      %s150 = sphi 0, %s134
    $region4: #{tpu_custom_call.1} parent=1 // loop_header_branch
      %19 = sbr.rel (%p17) target = $region8
    $region5: #{tpu_custom_call.1} parent=1 // loop_body
      %s21 = ssub.s32 %s16, 1
      %s22 = ssub.s32 %s16, 2
      %s23 = sadd.s32 %s16, 1
      %s24 = ssub.s32 %s16, %s23
      %p25 = scmp.eq.s32.totalorder %s24, 0
      %s27 = sadd.s32 %s26, 1
      %s28 = scalar_select %p25, %s26, %s27
      %p31 = pneg %p25
      %p32 = scmp.eq.s32.totalorder %s16, 1
      %p33 = por %p31, %p32
      %p34 = scmp.ne.s32.totalorder %s26, %s29
      %p35 = scmp.eq.s32.totalorder %s16, 0
      %p36 = por %p34, %p35
      %p37 = scmp.ne.s32.totalorder %s26, %s29
      %p38 = scmp.eq.s32.totalorder %s21, 1
      %p39 = por %p37, %p38
      %p40 = scmp.ne.s32.totalorder %s29, %s30
      %p41 = scmp.eq.s32.totalorder %s21, 0
      %p42 = por %p40, %p41
      %p43 = scmp.ne.s32.totalorder %s29, %s30
      %p44 = scmp.eq.s32.totalorder %s22, 1
      %p45 = por %p43, %p44
      %p47 = scmp.ne.s32.totalorder %s30, %s46
      %p48 = scmp.eq.s32.totalorder %s22, 0
      %p49 = por %p47, %p48
      %s50 = ssub.s32 %s16, %s23
      %p51 = scmp.eq.s32.totalorder %s50, 0
      %s53 = sadd.s32 %s52, 1
      %s54 = scalar_select %p51, %s52, %s53
      %p57 = pneg %p51
      %p58 = scmp.eq.s32.totalorder %s16, 1
      %p59 = por %p57, %p58
      %p60 = scmp.ne.s32.totalorder %s52, %s55
      %p61 = scmp.eq.s32.totalorder %s16, 0
      %p62 = por %p60, %p61
      %p63 = scmp.ne.s32.totalorder %s52, %s55
      %p64 = scmp.eq.s32.totalorder %s21, 1
      %p65 = por %p63, %p64
      %p66 = scmp.ne.s32.totalorder %s55, %s56
      %p67 = scmp.eq.s32.totalorder %s21, 0
      %p68 = por %p66, %p67
      %p69 = scmp.ne.s32.totalorder %s55, %s56
      %p70 = scmp.eq.s32.totalorder %s22, 1
      %p71 = por %p69, %p70
      %p73 = scmp.ne.s32.totalorder %s56, %s72
      %p74 = scmp.eq.s32.totalorder %s22, 0
      %p75 = por %p73, %p74
      %s76 = ssub.s32 %s16, %s23
      %p77 = scmp.eq.s32.totalorder %s76, 0
      %s79 = sadd.s32 %s78, 1
      %s80 = scalar_select %p77, %s78, %s79
      %p83 = pneg %p77
      %p84 = scmp.eq.s32.totalorder %s16, 1
      %p85 = por %p83, %p84
      %p86 = scmp.ne.s32.totalorder %s78, %s81
      %p87 = scmp.eq.s32.totalorder %s16, 0
      %p88 = por %p86, %p87
      %p89 = scmp.ne.s32.totalorder %s78, %s81
      %p90 = scmp.eq.s32.totalorder %s21, 1
      %p91 = por %p89, %p90
      %p92 = scmp.ne.s32.totalorder %s81, %s82
      %p93 = scmp.eq.s32.totalorder %s21, 0
      %p94 = por %p92, %p93
      %p95 = scmp.ne.s32.totalorder %s81, %s82
      %p96 = scmp.eq.s32.totalorder %s22, 1
      %p97 = por %p95, %p96
      %p99 = scmp.ne.s32.totalorder %s82, %s98
      %p100 = scmp.eq.s32.totalorder %s22, 0
      %p101 = por %p99, %p100
      %s102 = ssub.s32 %s16, %s23
      %p103 = scmp.eq.s32.totalorder %s102, 0
      %s105 = sadd.s32 %s104, 1
      %s106 = scalar_select %p103, %s104, %s105
      %p109 = pneg %p103
      %p110 = scmp.eq.s32.totalorder %s16, 1
      %p111 = por %p109, %p110
      %p112 = scmp.ne.s32.totalorder %s104, %s107
      %p113 = scmp.eq.s32.totalorder %s16, 0
      %p114 = por %p112, %p113
      %p115 = scmp.ne.s32.totalorder %s104, %s107
      %p116 = scmp.eq.s32.totalorder %s21, 1
      %p117 = por %p115, %p116
      %p118 = scmp.ne.s32.totalorder %s107, %s108
      %p119 = scmp.eq.s32.totalorder %s21, 0
      %p120 = por %p118, %p119
      %p121 = scmp.ne.s32.totalorder %s107, %s108
      %p122 = scmp.eq.s32.totalorder %s22, 1
      %p123 = por %p121, %p122
      %p125 = scmp.ne.s32.totalorder %s108, %s124
      %p126 = scmp.eq.s32.totalorder %s22, 0
      %p127 = por %p125, %p126
      %s128 = ssub.s32 %s16, %s23
      %p129 = scmp.eq.s32.totalorder %s128, 0
      %s131 = sadd.s32 %s130, 1
      %s132 = scalar_select %p129, %s130, %s131
      %p135 = pneg %p129
      %p136 = scmp.eq.s32.totalorder %s16, 1
      %p137 = por %p135, %p136
      %p138 = scmp.ne.s32.totalorder %s130, %s133
      %p139 = scmp.eq.s32.totalorder %s16, 0
      %p140 = por %p138, %p139
      %p141 = scmp.ne.s32.totalorder %s130, %s133
      %p142 = scmp.eq.s32.totalorder %s21, 1
      %p143 = por %p141, %p142
      %p144 = scmp.ne.s32.totalorder %s133, %s134
      %p145 = scmp.eq.s32.totalorder %s21, 0
      %p146 = por %p144, %p145
      %p147 = scmp.ne.s32.totalorder %s133, %s134
      %p148 = scmp.eq.s32.totalorder %s22, 1
      %p149 = por %p147, %p148
      %p151 = scmp.ne.s32.totalorder %s134, %s150
      %p152 = scmp.eq.s32.totalorder %s22, 0
      %p153 = por %p151, %p152
      %p154 = scmp.le.s32.totalorder 1, %s16
      %p155 = scmp.lt.s32.totalorder %s16, 3
      %p156 = pnand %p154, %p155
      %p157 = pneg %p156
      // Predicated region
      $region9: #{tpu_custom_call.1} parent=5 // pred_check
        _
      $region10: #{tpu_custom_call.1} parent=5 // pred_check_branch
        %159 = sbr.rel (%p156) target = $region12
      $region11: #{tpu_custom_call.1} parent=5 // pred_region
        %s160 = ssub.s32 %s16, 1
      $region12: #{tpu_custom_call.1} parent=5 // pred_fallthru
        _
      %p161 = scmp.lt.s32.totalorder %s16, 2
      // Predicated region
      $region13: #{tpu_custom_call.1} parent=5 // pred_check
        %p162 = pneg %p161
      $region14: #{tpu_custom_call.1} parent=5 // pred_check_branch
        %164 = sbr.rel (%p162) target = $region16
      $region15: #{tpu_custom_call.1} parent=5 // pred_region
        // Predicated region
        $region17: #{tpu_custom_call.1} parent=15 // pred_check
          %p165 = pneg %p36
        $region18: #{tpu_custom_call.1} parent=15 // pred_check_branch
          %167 = sbr.rel (%p165) target = $region20
        $region19: #{tpu_custom_call.1} parent=15 // pred_region
          %s168 = sand.u32 %s26, 1
          %s169 = scalar_lea.sflag [#allocation4], %s168
          %s170 = sand.u32 %s26, 1
          %s171 = smul.addr %s170, 64
          %s172 = scalar_lea.vmem [#allocation3], %s171
          %s174 = ssub.s32 1024, 1024
          %175 = vsyncadd %s169, %s174
          %s176 = smul.addr %s16, 8
          %s177 = smul.addr %s176, 128
          %s178 = scalar_lea.hbm %s0, %s177
          %s179 = sshll.u32 %s172, 4
          %s180 = int_to_ptr.vmem [resolvable:$true] %s179
          %185 = dma.hbm_to_vmem [thread:$0]  %s178, 1024, %s180, %s169, 128, 128, 8
        $region20: #{tpu_custom_call.1} parent=15 // pred_fallthru
          _
        // Predicated region
        $region21: #{tpu_custom_call.1} parent=15 // pred_check
          %p186 = pneg %p62
        $region22: #{tpu_custom_call.1} parent=15 // pred_check_branch
          %188 = sbr.rel (%p186) target = $region24
        $region23: #{tpu_custom_call.1} parent=15 // pred_region
          %p189 = scmp.lt.s32.totalorder %s16, 1
          %s190 = scalar_select %p189, %s16, 1
          %s191 = smul.addr %s190, 8
          %s192 = scalar_lea.vmem %s1, %s191
        $region24: #{tpu_custom_call.1} parent=15 // pred_fallthru
          _
        // Predicated region
        $region25: #{tpu_custom_call.1} parent=15 // pred_check
          %p193 = pneg %p88
        $region26: #{tpu_custom_call.1} parent=15 // pred_check_branch
          %195 = sbr.rel (%p193) target = $region28
        $region27: #{tpu_custom_call.1} parent=15 // pred_region
          %p196 = scmp.lt.s32.totalorder %s16, 1
          %s197 = scalar_select %p196, %s16, 1
          %s198 = smul.addr %s197, 8
          %s199 = scalar_lea.vmem %s2, %s198
        $region28: #{tpu_custom_call.1} parent=15 // pred_fallthru
          _
        // Predicated region
        $region29: #{tpu_custom_call.1} parent=15 // pred_check
          %p200 = pneg %p114
        $region30: #{tpu_custom_call.1} parent=15 // pred_check_branch
          %202 = sbr.rel (%p200) target = $region32
        $region31: #{tpu_custom_call.1} parent=15 // pred_region
          %p203 = scmp.lt.s32.totalorder %s16, 1
          %s204 = scalar_select %p203, %s16, 1
          %s205 = smul.addr %s204, 8
          %s206 = scalar_lea.vmem %s3, %s205
        $region32: #{tpu_custom_call.1} parent=15 // pred_fallthru
          _
      $region16: #{tpu_custom_call.1} parent=5 // pred_fallthru
        _
      %p207 = scmp.le.s32.totalorder 1, %s16
      %p208 = scmp.lt.s32.totalorder %s16, 3
      %p209 = pnand %p207, %p208
      %p210 = pneg %p209
      // Predicated region
      $region33: #{tpu_custom_call.1} parent=5 // pred_check
        _
      $region34: #{tpu_custom_call.1} parent=5 // pred_check_branch
        %212 = sbr.rel (%p209) target = $region36
      $region35: #{tpu_custom_call.1} parent=5 // pred_region
        %s213 = ssub.s32 %s16, 1
        %s214 = sand.u32 %s29, 1
        %s215 = scalar_lea.sflag [#allocation4], %s214
        %s216 = sand.u32 %s29, 1
        %s217 = smul.addr %s216, 64
        %s218 = scalar_lea.vmem [#allocation3], %s217
        // Predicated region
        $region37: #{tpu_custom_call.1} parent=35 // pred_check
          %p219 = pneg %p42
        $region38: #{tpu_custom_call.1} parent=35 // pred_check_branch
          %221 = sbr.rel (%p219) target = $region40
        $region39: #{tpu_custom_call.1} parent=35 // pred_region
          %222 = dma.done %s215, 1024
        $region40: #{tpu_custom_call.1} parent=35 // pred_fallthru
          _
        %s223 = sand.u32 %s29, 1
        %s224 = scalar_lea.sflag [#allocation4], %s223
        %s225 = sand.u32 %s29, 1
        %s226 = smul.addr %s225, 64
        %s227 = scalar_lea.vmem [#allocation3], %s226
        %p228 = pneg %p42
        %p229 = pneg %p39
        %p230 = scmp.lt.s32.totalorder %s21, 1
        %s231 = scalar_select %p230, %s21, 1
        %s232 = smul.addr %s231, 8
        %s233 = scalar_lea.vmem %s1, %s232
        %p234 = pneg %p68
        %p235 = pneg %p65
        %p236 = scmp.lt.s32.totalorder %s21, 1
        %s237 = scalar_select %p236, %s21, 1
        %s238 = smul.addr %s237, 8
        %s239 = scalar_lea.vmem %s2, %s238
        %p240 = pneg %p94
        %p241 = pneg %p91
        %p242 = scmp.lt.s32.totalorder %s21, 1
        %s243 = scalar_select %p242, %s21, 1
        %s244 = smul.addr %s243, 8
        %s245 = scalar_lea.vmem %s3, %s244
        %p246 = pneg %p120
        %p247 = pneg %p117
        %p248 = pneg %p146
        %p249 = pneg %p143
        %s250 = sand.u32 %s133, 1
        %s251 = scalar_lea.sflag [#allocation5], %s250
        %s252 = sand.u32 %s133, 1
        %s253 = scalar_lea.vmem [#allocation6], %s252
        %p254 = scmp.lt.s32.totalorder %s21, 1
        %s255 = scalar_select %p254, %s21, 1
        %s256 = smul.addr %s255, 8
        %s257 = scalar_lea.vmem %s1, %s256
        %p258 = scmp.lt.s32.totalorder %s21, 1
        %s259 = scalar_select %p258, %s21, 1
        %s260 = smul.addr %s259, 8
        %s261 = scalar_lea.vmem %s2, %s260
        %p262 = scmp.lt.s32.totalorder %s21, 1
        %s263 = scalar_select %p262, %s21, 1
        %s264 = smul.addr %s263, 8
        %s265 = scalar_lea.vmem %s3, %s264
        %v266 = vlaneseq
        %v267 = vand.u32 %v266, 127
        %v268 = vld [vmem:[%s257] sm:$0xff]
        %v269 = vld [vmem:[%s261] sm:$0xff]
        %v270 = vld [vmem:[%s265] sm:$0xff]
        %271 = vset.pattern.permute.xlu0 0
        %272 = vperm.xlu0 %271, %v268
        %v273 = vpop.permute.xlu0 %272
        %vm274 = vcmp.eq.s32.totalorder %v267, %v273
        %v275 = vsel %vm274, 1, 0
        %v276 = vcvt.s32.f32 %v275
        %277 = vset.pattern.permute.xlu0 1
        %278 = vperm.xlu0 %277, %v268
        %v279 = vpop.permute.xlu0 %278
        %vm280 = vcmp.eq.s32.totalorder %v267, %v279
        %v281 = vsel %vm280, 1, 0
        %v282 = vcvt.s32.f32 %v281
        %v283 = vld [vmem:[%s218] sm:$0xff]
        %v284 = vld [vmem:[%s218 + $0x8] sm:$0xff]
        %vm285 = vcmask 130048
        %v287 = vsel %vm285, %v276, 0
        %289 = vmatprep.subr.mxu0 0.0
        %290 = vmatpush1.msra.mxu0 %v283
        %291 = vmatprep.subr.mxu0 0.0
        %292 = vmatpush1.msra.mxu0 %v284
        %293 = vmatprep.subr.mxu0 0.0
        %294 = vmatpush1.msra.mxu0 0.0
        %295 = vmatprep.subr.mxu0 0.0
        %296 = vmatpush1.msra.mxu0 0.0
        %297 = vmatprep.subr.mxu0 0.0
        %298 = vmatpush1.msra.mxu0 0.0
        %299 = vmatprep.subr.mxu0 0.0
        %300 = vmatpush1.msra.mxu0 0.0
        %301 = vmatprep.subr.mxu0 0.0
        %302 = vmatpush1.msra.mxu0 0.0
        %303 = vmatprep.subr.mxu0 0.0
        %304 = vmatpush1.msra.mxu0 0.0
        %305 = vmatprep.subr.mxu0 0.0
        %306 = vmatpush1.msra.mxu0 0.0
        %307 = vmatprep.subr.mxu0 0.0
        %308 = vmatpush1.msra.mxu0 0.0
        %309 = vmatprep.subr.mxu0 0.0
        %310 = vmatpush1.msra.mxu0 0.0
        %311 = vmatprep.subr.mxu0 0.0
        %312 = vmatpush1.msra.mxu0 0.0
        %313 = vmatprep.subr.mxu0 0.0
        %314 = vmatpush1.msra.mxu0 0.0
        %315 = vmatprep.subr.mxu0 0.0
        %316 = vmatpush1.msra.mxu0 0.0
        %317 = vmatprep.subr.mxu0 0.0
        %318 = vmatpush1.msra.mxu0 0.0
        %319 = vmatprep.subr.mxu0 0.0
        %320 = vmatpush1.msra.mxu0 0.0
        %321 = vmatprep.subr.mxu0 0.0
        %322 = vmatpush1.msra.mxu0 0.0
        %323 = vmatprep.subr.mxu0 0.0
        %324 = vmatpush1.msra.mxu0 0.0
        %325 = vmatprep.subr.mxu0 0.0
        %326 = vmatpush1.msra.mxu0 0.0
        %327 = vmatprep.subr.mxu0 0.0
        %328 = vmatpush1.msra.mxu0 0.0
        %329 = vmatprep.subr.mxu0 0.0
        %330 = vmatpush1.msra.mxu0 0.0
        %331 = vmatprep.subr.mxu0 0.0
        %332 = vmatpush1.msra.mxu0 0.0
        %333 = vmatprep.subr.mxu0 0.0
        %334 = vmatpush1.msra.mxu0 0.0
        %335 = vmatprep.subr.mxu0 0.0
        %336 = vmatpush1.msra.mxu0 0.0
        %337 = vmatprep.subr.mxu0 0.0
        %338 = vmatpush1.msra.mxu0 0.0
        %339 = vmatprep.subr.mxu0 0.0
        %340 = vmatpush1.msra.mxu0 0.0
        %341 = vmatprep.subr.mxu0 0.0
        %342 = vmatpush1.msra.mxu0 0.0
        %343 = vmatprep.subr.mxu0 0.0
        %344 = vmatpush1.msra.mxu0 0.0
        %345 = vmatprep.subr.mxu0 0.0
        %346 = vmatpush1.msra.mxu0 0.0
        %347 = vmatprep.subr.mxu0 0.0
        %348 = vmatpush1.msra.mxu0 0.0
        %349 = vmatprep.subr.mxu0 0.0
        %350 = vmatpush1.msra.mxu0 0.0
        %351 = vmatprep.subr.mxu0 0.0
        %352 = vmatpush1.msra.mxu0 0.0
        %353 = vmatprep.mubr.f32.mxu0 0.0
        %354 = vmatmul.mubr.f32.gmra.mrb[0].mxu0 %v287
        %v355 = vpop.f32.mrb[0].mxu0
        %v356 = vadd.f32 0.0, %v355
        %v357 = vpop.f32.mrb[0].mxu0
        %358 = vdwg.mxu0
        %v359 = vmul.f32 %v356, %v282
        %v360 = vsel %vm285, %v359, 0.0
        %361 = vadd.xlane.f32.xlu0 %v360
        %v362 = vpop.xlane.xlu0 %361
        %vm363 = vcmask 7168
        %364 = vst.msk [vmem:[#allocation2] sm:$0xff] %vm363, %v362
        %s365 = scalar_lea.vmem %s218, 16 [#allocation3]
        %v366 = vld [vmem:[%s365] sm:$0xff]
        %v367 = vld [vmem:[%s365 + $0x8] sm:$0xff]
        %368 = vmatprep.subr.mxu0 0.0
        %369 = vmatpush1.msra.mxu0 %v366
        %370 = vmatprep.subr.mxu0 0.0
        %371 = vmatpush1.msra.mxu0 %v367
        %372 = vmatprep.subr.mxu0 0.0
        %373 = vmatpush1.msra.mxu0 0.0
        %374 = vmatprep.subr.mxu0 0.0
        %375 = vmatpush1.msra.mxu0 0.0
        %376 = vmatprep.subr.mxu0 0.0
        %377 = vmatpush1.msra.mxu0 0.0
        %378 = vmatprep.subr.mxu0 0.0
        %379 = vmatpush1.msra.mxu0 0.0
        %380 = vmatprep.subr.mxu0 0.0
        %381 = vmatpush1.msra.mxu0 0.0
        %382 = vmatprep.subr.mxu0 0.0
        %383 = vmatpush1.msra.mxu0 0.0
        %384 = vmatprep.subr.mxu0 0.0
        %385 = vmatpush1.msra.mxu0 0.0
        %386 = vmatprep.subr.mxu0 0.0
        %387 = vmatpush1.msra.mxu0 0.0
        %388 = vmatprep.subr.mxu0 0.0
        %389 = vmatpush1.msra.mxu0 0.0
        %390 = vmatprep.subr.mxu0 0.0
        %391 = vmatpush1.msra.mxu0 0.0
        %392 = vmatprep.subr.mxu0 0.0
        %393 = vmatpush1.msra.mxu0 0.0
        %394 = vmatprep.subr.mxu0 0.0
        %395 = vmatpush1.msra.mxu0 0.0
        %396 = vmatprep.subr.mxu0 0.0
        %397 = vmatpush1.msra.mxu0 0.0
        %398 = vmatprep.subr.mxu0 0.0
        %399 = vmatpush1.msra.mxu0 0.0
        %400 = vmatprep.subr.mxu0 0.0
        %401 = vmatpush1.msra.mxu0 0.0
        %402 = vmatprep.subr.mxu0 0.0
        %403 = vmatpush1.msra.mxu0 0.0
        %404 = vmatprep.subr.mxu0 0.0
        %405 = vmatpush1.msra.mxu0 0.0
        %406 = vmatprep.subr.mxu0 0.0
        %407 = vmatpush1.msra.mxu0 0.0
        %408 = vmatprep.subr.mxu0 0.0
        %409 = vmatpush1.msra.mxu0 0.0
        %410 = vmatprep.subr.mxu0 0.0
        %411 = vmatpush1.msra.mxu0 0.0
        %412 = vmatprep.subr.mxu0 0.0
        %413 = vmatpush1.msra.mxu0 0.0
        %414 = vmatprep.subr.mxu0 0.0
        %415 = vmatpush1.msra.mxu0 0.0
        %416 = vmatprep.subr.mxu0 0.0
        %417 = vmatpush1.msra.mxu0 0.0
        %418 = vmatprep.subr.mxu0 0.0
        %419 = vmatpush1.msra.mxu0 0.0
        %420 = vmatprep.subr.mxu0 0.0
        %421 = vmatpush1.msra.mxu0 0.0
        %422 = vmatprep.subr.mxu0 0.0
        %423 = vmatpush1.msra.mxu0 0.0
        %424 = vmatprep.subr.mxu0 0.0
        %425 = vmatpush1.msra.mxu0 0.0
        %426 = vmatprep.subr.mxu0 0.0
        %427 = vmatpush1.msra.mxu0 0.0
        %428 = vmatprep.subr.mxu0 0.0
        %429 = vmatpush1.msra.mxu0 0.0
        %430 = vmatprep.subr.mxu0 0.0
        %431 = vmatpush1.msra.mxu0 0.0
        %432 = vmatprep.mubr.f32.mxu0 0.0
        %433 = vmatmul.mubr.f32.gmra.mrb[0].mxu0 %v287
        %v434 = vpop.f32.mrb[0].mxu0
        %v435 = vadd.f32 0.0, %v434
        %v436 = vpop.f32.mrb[0].mxu0
        %437 = vdwg.mxu0
        %v438 = vmul.f32 %v435, %v282
        %v439 = vsel %vm285, %v438, 0.0
        %440 = vadd.xlane.f32.xlu0 %v439
        %v441 = vpop.xlane.xlu0 %440
        %vm442 = vcmask 15368
        %443 = vst.msk [vmem:[#allocation2] sm:$0xff] %vm442, %v441
        %s444 = scalar_lea.vmem %s218, 32 [#allocation3]
        %v445 = vld [vmem:[%s444] sm:$0xff]
        %v446 = vld [vmem:[%s444 + $0x8] sm:$0xff]
        %447 = vmatprep.subr.mxu0 0.0
        %448 = vmatpush1.msra.mxu0 %v445
        %449 = vmatprep.subr.mxu0 0.0
        %450 = vmatpush1.msra.mxu0 %v446
        %451 = vmatprep.subr.mxu0 0.0
        %452 = vmatpush1.msra.mxu0 0.0
        %453 = vmatprep.subr.mxu0 0.0
        %454 = vmatpush1.msra.mxu0 0.0
        %455 = vmatprep.subr.mxu0 0.0
        %456 = vmatpush1.msra.mxu0 0.0
        %457 = vmatprep.subr.mxu0 0.0
        %458 = vmatpush1.msra.mxu0 0.0
        %459 = vmatprep.subr.mxu0 0.0
        %460 = vmatpush1.msra.mxu0 0.0
        %461 = vmatprep.subr.mxu0 0.0
        %462 = vmatpush1.msra.mxu0 0.0
        %463 = vmatprep.subr.mxu0 0.0
        %464 = vmatpush1.msra.mxu0 0.0
        %465 = vmatprep.subr.mxu0 0.0
        %466 = vmatpush1.msra.mxu0 0.0
        %467 = vmatprep.subr.mxu0 0.0
        %468 = vmatpush1.msra.mxu0 0.0
        %469 = vmatprep.subr.mxu0 0.0
        %470 = vmatpush1.msra.mxu0 0.0
        %471 = vmatprep.subr.mxu0 0.0
        %472 = vmatpush1.msra.mxu0 0.0
        %473 = vmatprep.subr.mxu0 0.0
        %474 = vmatpush1.msra.mxu0 0.0
        %475 = vmatprep.subr.mxu0 0.0
        %476 = vmatpush1.msra.mxu0 0.0
        %477 = vmatprep.subr.mxu0 0.0
        %478 = vmatpush1.msra.mxu0 0.0
        %479 = vmatprep.subr.mxu0 0.0
        %480 = vmatpush1.msra.mxu0 0.0
        %481 = vmatprep.subr.mxu0 0.0
        %482 = vmatpush1.msra.mxu0 0.0
        %483 = vmatprep.subr.mxu0 0.0
        %484 = vmatpush1.msra.mxu0 0.0
        %485 = vmatprep.subr.mxu0 0.0
        %486 = vmatpush1.msra.mxu0 0.0
        %487 = vmatprep.subr.mxu0 0.0
        %488 = vmatpush1.msra.mxu0 0.0
        %489 = vmatprep.subr.mxu0 0.0
        %490 = vmatpush1.msra.mxu0 0.0
        %491 = vmatprep.subr.mxu0 0.0
        %492 = vmatpush1.msra.mxu0 0.0
        %493 = vmatprep.subr.mxu0 0.0
        %494 = vmatpush1.msra.mxu0 0.0
        %495 = vmatprep.subr.mxu0 0.0
        %496 = vmatpush1.msra.mxu0 0.0
        %497 = vmatprep.subr.mxu0 0.0
        %498 = vmatpush1.msra.mxu0 0.0
        %499 = vmatprep.subr.mxu0 0.0
        %500 = vmatpush1.msra.mxu0 0.0
        %501 = vmatprep.subr.mxu0 0.0
        %502 = vmatpush1.msra.mxu0 0.0
        %503 = vmatprep.subr.mxu0 0.0
        %504 = vmatpush1.msra.mxu0 0.0
        %505 = vmatprep.subr.mxu0 0.0
        %506 = vmatpush1.msra.mxu0 0.0
        %507 = vmatprep.subr.mxu0 0.0
        %508 = vmatpush1.msra.mxu0 0.0
        %509 = vmatprep.subr.mxu0 0.0
        %510 = vmatpush1.msra.mxu0 0.0
        %511 = vmatprep.mubr.f32.mxu0 0.0
        %512 = vmatmul.mubr.f32.gmra.mrb[0].mxu0 %v287
        %v513 = vpop.f32.mrb[0].mxu0
        %v514 = vadd.f32 0.0, %v513
        %v515 = vpop.f32.mrb[0].mxu0
        %516 = vdwg.mxu0
        %v517 = vmul.f32 %v514, %v282
        %v518 = vsel %vm285, %v517, 0.0
        %519 = vadd.xlane.f32.xlu0 %v518
        %v520 = vpop.xlane.xlu0 %519
        %vm521 = vcmask 23568
        %522 = vst.msk [vmem:[#allocation2] sm:$0xff] %vm521, %v520
        %s523 = scalar_lea.vmem %s218, 48 [#allocation3]
        %v524 = vld [vmem:[%s523] sm:$0xff]
        %v525 = vld [vmem:[%s523 + $0x8] sm:$0xff]
        %526 = vmatprep.subr.mxu0 0.0
        %527 = vmatpush1.msra.mxu0 %v524
        %528 = vmatprep.subr.mxu0 0.0
        %529 = vmatpush1.msra.mxu0 %v525
        %530 = vmatprep.subr.mxu0 0.0
        %531 = vmatpush1.msra.mxu0 0.0
        %532 = vmatprep.subr.mxu0 0.0
        %533 = vmatpush1.msra.mxu0 0.0
        %534 = vmatprep.subr.mxu0 0.0
        %535 = vmatpush1.msra.mxu0 0.0
        %536 = vmatprep.subr.mxu0 0.0
        %537 = vmatpush1.msra.mxu0 0.0
        %538 = vmatprep.subr.mxu0 0.0
        %539 = vmatpush1.msra.mxu0 0.0
        %540 = vmatprep.subr.mxu0 0.0
        %541 = vmatpush1.msra.mxu0 0.0
        %542 = vmatprep.subr.mxu0 0.0
        %543 = vmatpush1.msra.mxu0 0.0
        %544 = vmatprep.subr.mxu0 0.0
        %545 = vmatpush1.msra.mxu0 0.0
        %546 = vmatprep.subr.mxu0 0.0
        %547 = vmatpush1.msra.mxu0 0.0
        %548 = vmatprep.subr.mxu0 0.0
        %549 = vmatpush1.msra.mxu0 0.0
        %550 = vmatprep.subr.mxu0 0.0
        %551 = vmatpush1.msra.mxu0 0.0
        %552 = vmatprep.subr.mxu0 0.0
        %553 = vmatpush1.msra.mxu0 0.0
        %554 = vmatprep.subr.mxu0 0.0
        %555 = vmatpush1.msra.mxu0 0.0
        %556 = vmatprep.subr.mxu0 0.0
        %557 = vmatpush1.msra.mxu0 0.0
        %558 = vmatprep.subr.mxu0 0.0
        %559 = vmatpush1.msra.mxu0 0.0
        %560 = vmatprep.subr.mxu0 0.0
        %561 = vmatpush1.msra.mxu0 0.0
        %562 = vmatprep.subr.mxu0 0.0
        %563 = vmatpush1.msra.mxu0 0.0
        %564 = vmatprep.subr.mxu0 0.0
        %565 = vmatpush1.msra.mxu0 0.0
        %566 = vmatprep.subr.mxu0 0.0
        %567 = vmatpush1.msra.mxu0 0.0
        %568 = vmatprep.subr.mxu0 0.0
        %569 = vmatpush1.msra.mxu0 0.0
        %570 = vmatprep.subr.mxu0 0.0
        %571 = vmatpush1.msra.mxu0 0.0
        %572 = vmatprep.subr.mxu0 0.0
        %573 = vmatpush1.msra.mxu0 0.0
        %574 = vmatprep.subr.mxu0 0.0
        %575 = vmatpush1.msra.mxu0 0.0
        %576 = vmatprep.subr.mxu0 0.0
        %577 = vmatpush1.msra.mxu0 0.0
        %578 = vmatprep.subr.mxu0 0.0
        %579 = vmatpush1.msra.mxu0 0.0
        %580 = vmatprep.subr.mxu0 0.0
        %581 = vmatpush1.msra.mxu0 0.0
        %582 = vmatprep.subr.mxu0 0.0
        %583 = vmatpush1.msra.mxu0 0.0
        %584 = vmatprep.subr.mxu0 0.0
        %585 = vmatpush1.msra.mxu0 0.0
        %586 = vmatprep.subr.mxu0 0.0
        %587 = vmatpush1.msra.mxu0 0.0
        %588 = vmatprep.subr.mxu0 0.0
        %589 = vmatpush1.msra.mxu0 0.0
        %590 = vmatprep.mubr.f32.mxu0 0.0
        %591 = vmatmul.mubr.f32.gmra.mrb[0].mxu0 %v287
        %v592 = vpop.f32.mrb[0].mxu0
        %v593 = vadd.f32 0.0, %v592
        %v594 = vpop.f32.mrb[0].mxu0
        %595 = vdwg.mxu0
        %v596 = vmul.f32 %v593, %v282
        %v597 = vsel %vm285, %v596, 0.0
        %598 = vadd.xlane.f32.xlu0 %v597
        %v599 = vpop.xlane.xlu0 %598
        %vm600 = vcmask 31768
        %601 = vst.msk [vmem:[#allocation2] sm:$0xff] %vm600, %v599
        %v602 = vld [vmem:[#allocation2] sm:$0xff]
        %vm603 = vcmp.ne.f32.partialorder %v270, %v270
        %vm604 = vmxor %vm603, 1
        %v605 = vsel %vm604, 1, 0
        %v606 = vcvt.s32.f32 %v605
        %608 = vset.pattern.permute.xlu0 0
        %609 = vperm.xlu0 %608, %v269
        %v610 = vpop.permute.xlu0 %609
        %v612 = vmul.f32 %v610, %v606
        %v613 = vmul.f32 %v602, %v612
        %v614 = vmul.f32 %v270, %v612
        %v615 = vsub.f32 %v613, %v614
        %v616 = vand.u32 2147483647, %v615
        %vm617 = vcmask 31744
        %v618 = vsel %vm617, %v616, 0.0
        %v619 = vrot.slane %v618, 4
        %v620 = vadd.f32 %v618, %v619
        %v621 = vrot.slane %v620, 2
        %v622 = vadd.f32 %v620, %v621
        %v623 = vrot.slane %v622, 1
        %v624 = vadd.f32 %v622, %v623
        %v625 = vadd.f32 %v624, 0.0
        %v626 = vsel %vm363, %v269, 0.0
        %627 = vadd.xlane.f32.xlu0 %v626
        %v628 = vpop.xlane.xlu0 %627
        %v629 = vrot.slane %v628, 4
        %v630 = vadd.f32 %v628, %v629
        %v631 = vrot.slane %v630, 2
        %v632 = vadd.f32 %v630, %v631
        %v633 = vrot.slane %v632, 1
        %v634 = vadd.f32 %v632, %v633
        %s635 = vtos %v634
        %v636 = vstv %s635
        %v637 = vadd.f32 %v636, 0.0
        %638 = vst [vmem:[%s253] sm:$0x1] 0.0
        %vm639 = vcmask 24576
        %640 = vst.msk [vmem:[%s253] sm:$0x1] %vm639, %v625
        %vm641 = vcmask 32800
        %642 = vst.msk [vmem:[%s253] sm:$0x1] %vm641, %v637
        %s643 = sand.u32 %s133, 1
        %s644 = scalar_lea.sflag [#allocation5], %s643
        %s645 = sand.u32 %s133, 1
        %s646 = scalar_lea.vmem [#allocation6], %s645
        // Predicated region
        $region41: #{tpu_custom_call.1} parent=35 // pred_check
          %p647 = pneg %p143
        $region42: #{tpu_custom_call.1} parent=35 // pred_check_branch
          %649 = sbr.rel (%p647) target = $region44
        $region43: #{tpu_custom_call.1} parent=35 // pred_region
          %s651 = ssub.s32 16, 16
          %652 = vsyncadd %s644, %s651
          %s653 = smul.addr %s21, 16
          %s654 = scalar_lea.hbm %s4, %s653
          %s656 = sshll.u32 %s646, 4
          %s657 = int_to_ptr.vmem [resolvable:$true] %s656
          %659 = dma.vmem_to_hbm [thread:$0]  %s657, 16, %s654, %s644
        $region44: #{tpu_custom_call.1} parent=35 // pred_fallthru
          _
      $region36: #{tpu_custom_call.1} parent=5 // pred_fallthru
        _
      %p660 = scmp.le.s32.totalorder 2, %s16
      // Predicated region
      $region45: #{tpu_custom_call.1} parent=5 // pred_check
        %p661 = pneg %p660
      $region46: #{tpu_custom_call.1} parent=5 // pred_check_branch
        %663 = sbr.rel (%p661) target = $region48
      $region47: #{tpu_custom_call.1} parent=5 // pred_region
        %s664 = ssub.s32 %s16, 2
        // Predicated region
        $region49: #{tpu_custom_call.1} parent=47 // pred_check
          %p665 = pneg %p149
        $region50: #{tpu_custom_call.1} parent=47 // pred_check_branch
          %667 = sbr.rel (%p665) target = $region52
        $region51: #{tpu_custom_call.1} parent=47 // pred_region
          %s668 = sand.u32 %s134, 1
          %s669 = scalar_lea.sflag [#allocation5], %s668
          %s670 = sand.u32 %s134, 1
          %s671 = scalar_lea.vmem [#allocation6], %s670
          %672 = dma.done %s669, 16
        $region52: #{tpu_custom_call.1} parent=47 // pred_fallthru
          _
      $region48: #{tpu_custom_call.1} parent=5 // pred_fallthru
        _
    $region6: #{tpu_custom_call.1} parent=1 // loop_footer
      %s20 = sadd.s32 1, %s16
    $region7: #{tpu_custom_call.1} parent=1 // loop_footer_branch
      %15 = sbr.rel target = $region3
    $region8: #{tpu_custom_call.1} parent=1 // loop_exit
      _
    %673 = vsyncpa [#allocation4], 1
    %s674 = scalar_lea.sflag [#allocation4], 1
    %675 = vsyncpa %s674, 1
    %676 = vsyncpa [#allocation5], 1
    %s677 = scalar_lea.sflag [#allocation5], 1
    %678 = vsyncpa %s677, 1

</llo_original>
